<compile_context>
chip_gen: v5e
topology: v5e:2x2
jax: 0.10.0
libtpu: 0.0.40
codegen_flags: <defaults>
</compile_context>

<pallas_src>
import jax
import jax.numpy as jnp
from jax.experimental import pallas as pl
from jax.experimental.pallas import tpu as pltpu


IN_FEATURES = 1024            # model.roi_heads.box_predictor.cls_score.in_features
NUM_CLASSES = 10              # config.num_classes
NUM_BBOX_OUT = NUM_CLASSES * 4
FUSED_OUT = 128               # lane-dense fused output width (10 + 40 -> pad to 128)


def _tensorcores_per_chip() -> int:
    """Best-effort detection of dual-TensorCore chips (v7x); default 1."""
    try:
        kind = jax.devices()[0].device_kind.lower()
    except Exception:
        return 1
    return 2 if ("v7" in kind or "7x" in kind) else 1


_NUM_TENSORCORES = _tensorcores_per_chip()


def _fused_head_kernel(x_ref, w_ref, b_ref, out_ref):
    """One row-tile of RoI features -> fused [scores | bbox_deltas | pad] block."""
    # f32 x lives in VMEM; cast to bf16 on the VPU right before the MXU dot
    # (free, hidden under the DMA/MXU).  Accumulate f32; bias add + store f32.
    x_bf = x_ref[...].astype(jnp.bfloat16)
    acc = jnp.dot(x_bf, w_ref[...], preferred_element_type=jnp.float32)
    out_ref[...] = (acc + b_ref[...]).astype(out_ref.dtype)


def fuse_head_params(w_cls, b_cls, w_bbox, b_bbox):
    """Pack both heads into one [1024, 128] bf16 weight and one [1, 128] f32 bias.

    Call ONCE at model init (not per forward call); the returned arrays are
    reused by every `fast_rcnn_predictor` invocation.

    NOTE: weights here use [C_in, C_out] layout (already transposed for
    `x @ W`).  torch nn.Linear stores [out_features, in_features]; transpose
    when importing real torchvision checkpoints.
    """
    w_cls = jnp.asarray(w_cls, jnp.float32).reshape(IN_FEATURES, NUM_CLASSES)
    w_bbox = jnp.asarray(w_bbox, jnp.float32).reshape(IN_FEATURES, NUM_BBOX_OUT)
    w = jnp.zeros((IN_FEATURES, FUSED_OUT), jnp.float32)
    w = w.at[:, :NUM_CLASSES].set(w_cls)
    w = w.at[:, NUM_CLASSES:NUM_CLASSES + NUM_BBOX_OUT].set(w_bbox)

    b = jnp.zeros((1, FUSED_OUT), jnp.float32)
    b = b.at[:, :NUM_CLASSES].set(
        jnp.asarray(b_cls, jnp.float32).reshape(1, NUM_CLASSES))
    b = b.at[:, NUM_CLASSES:NUM_CLASSES + NUM_BBOX_OUT].set(
        jnp.asarray(b_bbox, jnp.float32).reshape(1, NUM_BBOX_OUT))

    # bf16 weight halves the constant-weight DMA and feeds the MXU natively.
    return w.astype(jnp.bfloat16), b


def _choose_row_tile(n: int) -> int:
    """Pick the per-step row tile based on batch size and TensorCore count."""
    n8 = pl.cdiv(n, 8) * 8
    if _NUM_TENSORCORES >= 2 and n8 > 256:
        # >= 2 "parallel" grid steps so both v7x TensorCores get work.
        tile_m = min(512, pl.cdiv(pl.cdiv(n8, 2), 8) * 8)
    else:
        # Single-TC chips (v5e/v6e): one big tile amortizes the ~0.35 us/step
        # overhead.  Cap at 1024 rows: f32 x tile = 4 MiB, double-buffered
        # ~9.5 MiB total with W/out buffers -> inside v5e's 16 MiB default.
        tile_m = min(1024, n8)
    return tile_m


@jax.jit
def fast_rcnn_predictor(x, w_fused_bf16, b_fused):
    """x: [N, 1024, 1, 1] or [N, 1024].  Returns (scores [N,10], deltas [N,40]).

    `w_fused_bf16` / `b_fused` come from `fuse_head_params` (computed once).
    """
    if x.ndim == 4:
        # mirrors torch._assert(list(x.shape[2:]) == [1, 1], ...) + flatten
        assert x.shape[2] == 1 and x.shape[3] == 1
        x = x.reshape(x.shape[0], x.shape[1])

    n, c_in = x.shape
    assert c_in == IN_FEATURES

    tile_m = _choose_row_tile(n)
    grid_m = pl.cdiv(n, tile_m)   # ceil grid; edge block masked, no jnp.pad

    cost = pl.CostEstimate(
        flops=2 * n * IN_FEATURES * FUSED_OUT,
        transcendentals=0,
        bytes_accessed=(n * IN_FEATURES * 4          # x (f32)
                        + IN_FEATURES * FUSED_OUT * 2  # fused W (bf16)
                        + n * FUSED_OUT * 4))          # out (f32)

    out = pl.pallas_call(
        _fused_head_kernel,
        out_shape=jax.ShapeDtypeStruct((n, FUSED_OUT), jnp.float32),
        grid_spec=pltpu.PrefetchScalarGridSpec(
            num_scalar_prefetch=0,
            grid=(grid_m,),
            in_specs=[
                pl.BlockSpec((tile_m, IN_FEATURES), lambda i: (i, 0)),     # x tile
                pl.BlockSpec((IN_FEATURES, FUSED_OUT), lambda i: (0, 0)),  # fused W
                pl.BlockSpec((1, FUSED_OUT), lambda i: (0, 0)),            # fused b
            ],
            out_specs=pl.BlockSpec((tile_m, FUSED_OUT), lambda i: (i, 0)),
        ),
        compiler_params=pltpu.CompilerParams(
            dimension_semantics=("parallel",)),
        cost_estimate=cost,
    )(x, w_fused_bf16, b_fused)

    # Single slice of the lane-dense result, then split at the consumer.
    head = out[:, :NUM_CLASSES + NUM_BBOX_OUT]
    scores = head[:, :NUM_CLASSES]
    deltas = head[:, NUM_CLASSES:]
    return scores, deltas


def init_predictor_params(key):
    """Deterministic init matching nn.Linear default (uniform +-1/sqrt(fan_in)).

    Weights returned in [C_in, C_out] layout (already transposed for x @ W).
    """
    k1, k2, k3, k4 = jax.random.split(key, 4)
    bound = 1.0 / jnp.sqrt(jnp.float32(IN_FEATURES))
    w_cls = jax.random.uniform(k1, (IN_FEATURES, NUM_CLASSES),
                               jnp.float32, -bound, bound)
    b_cls = jax.random.uniform(k2, (1, NUM_CLASSES),
                               jnp.float32, -bound, bound)
    w_bbox = jax.random.uniform(k3, (IN_FEATURES, NUM_BBOX_OUT),
                                jnp.float32, -bound, bound)
    b_bbox = jax.random.uniform(k4, (1, NUM_BBOX_OUT),
                                jnp.float32, -bound, bound)
    return w_cls, b_cls, w_bbox, b_bbox


if __name__ == "__main__":
    key = jax.random.PRNGKey(0)
    k_param, k_x = jax.random.split(key)

    w_cls, b_cls, w_bbox, b_bbox = init_predictor_params(k_param)

    # One-time fusion / bf16 cast at "model init" (hoisted out of the call path).
    w_fused, b_fused = fuse_head_params(w_cls, b_cls, w_bbox, b_bbox)
    jax.block_until_ready((w_fused, b_fused))

    # Small deterministic batch of pooled RoI features, NCHW with 1x1 spatial
    # exactly as the torchvision box head passes them to FastRCNNPredictor.
    num_rois = 16
    x = jax.random.normal(k_x, (num_rois, IN_FEATURES, 1, 1), jnp.float32)

    scores, deltas = fast_rcnn_predictor(x, w_fused, b_fused)
    jax.block_until_ready((scores, deltas))

    # Reference with the same bf16 operand quantization (f32 accumulation),
    # so the tolerance stays tight.
    x_flat = x.reshape(num_rois, IN_FEATURES)
    x_q = x_flat.astype(jnp.bfloat16).astype(jnp.float32)
    w_fused_f32 = w_fused.astype(jnp.float32)
    ref_scores = x_q @ w_fused_f32[:, :NUM_CLASSES] + b_fused[:, :NUM_CLASSES]
    ref_deltas = (x_q @ w_fused_f32[:, NUM_CLASSES:NUM_CLASSES + NUM_BBOX_OUT]
                  + b_fused[:, NUM_CLASSES:NUM_CLASSES + NUM_BBOX_OUT])

    assert scores.shape == (num_rois, NUM_CLASSES)
    assert deltas.shape == (num_rois, NUM_BBOX_OUT)
    assert jnp.allclose(scores, ref_scores, atol=1e-3, rtol=1e-3)
    assert jnp.allclose(deltas, ref_deltas, atol=1e-3, rtol=1e-3)
    # Loose sanity check against the pure-f32 semantics of the original head
    # (bf16 quantization of x/W shifts values slightly; see review notes).
    assert jnp.allclose(scores, x_flat @ w_cls + b_cls, atol=5e-2, rtol=5e-2)
    assert jnp.allclose(deltas, x_flat @ w_bbox + b_bbox, atol=5e-2, rtol=5e-2)

    print("KERNEL_OK")
</pallas_src>

<mosaic_0001>
module attributes {stable_mosaic.version = 11 : i64} {
  func.func @_fused_head_kernel(%arg0: i32, %arg1: memref<16x1024xf32, #tpu.memory_space<vmem>>, %arg2: memref<1024x128xbf16, #tpu.memory_space<vmem>>, %arg3: memref<1x128xf32, #tpu.memory_space<vmem>>, %arg4: memref<16x128xf32, #tpu.memory_space<vmem>>) attributes {dimension_semantics = [#tpu.dimension_semantics<parallel>], iteration_bounds = array<i64: 1>, scalar_prefetch = 0 : i64, scratch_operands = 0 : i64, tpu.core_type = #tpu.core_type<tc>, window_params = [{transform_indices = @transform_0, window_bounds = array<i64: 16, 1024>}, {pipeline_mode = #tpu.pipeline_mode<synchronous>, transform_indices = @transform_1, window_bounds = array<i64: 1024, 128>}, {pipeline_mode = #tpu.pipeline_mode<synchronous>, transform_indices = @transform_2, window_bounds = array<i64: 1, 128>}, {transform_indices = @transform_3, window_bounds = array<i64: 16, 128>}]} {
    %c0 = arith.constant 0 : index
    %c0_0 = arith.constant 0 : index
    %0 = vector.load %arg1[%c0, %c0_0] : memref<16x1024xf32, #tpu.memory_space<vmem>>, vector<16x1024xf32>
    %1 = arith.truncf %0 : vector<16x1024xf32> to vector<16x1024xbf16>
    %c0_1 = arith.constant 0 : index
    %c0_2 = arith.constant 0 : index
    %2 = vector.load %arg2[%c0_1, %c0_2] : memref<1024x128xbf16, #tpu.memory_space<vmem>>, vector<1024x128xbf16>
    %cst = arith.constant dense<0.000000e+00> : vector<16x128xf32>
    %3 = tpu.matmul %1, %2, %cst {dimension_numbers = #tpu.dot_dimension_numbers<[1], [0], [0], [1], [0, 0, 1, 1], [], []>} : vector<16x1024xbf16>, vector<1024x128xbf16>, vector<16x128xf32> -> vector<16x128xf32>
    %c0_3 = arith.constant 0 : index
    %c0_4 = arith.constant 0 : index
    %4 = vector.load %arg3[%c0_3, %c0_4] : memref<1x128xf32, #tpu.memory_space<vmem>>, vector<1x128xf32>
    %5 = vector.broadcast %4 : vector<1x128xf32> to vector<16x128xf32>
    %6 = arith.addf %3, %5 : vector<16x128xf32>
    %c0_5 = arith.constant 0 : index
    %c0_6 = arith.constant 0 : index
    %7 = vector.load %arg4[%c0_5, %c0_6] : memref<16x128xf32, #tpu.memory_space<vmem>>, vector<16x128xf32>
    tpu.vector_store %arg4[%c0_5, %c0_6], %6 {strides = array<i32>} : memref<16x128xf32, #tpu.memory_space<vmem>>, vector<16x128xf32>,
    return
  }
  func.func @transform_0(%arg0: i32) -> (i32, i32) {
    %c0_i32 = arith.constant 0 : i32
    %c0_i32_0 = arith.constant 0 : i32
    return %arg0, %c0_i32 : i32, i32
  }
  func.func @transform_1(%arg0: i32) -> (i32, i32) {
    %c0_i32 = arith.constant 0 : i32
    %c0_i32_0 = arith.constant 0 : i32
    %c0_i32_1 = arith.constant 0 : i32
    return %c0_i32, %c0_i32_0 : i32, i32
  }
  func.func @transform_2(%arg0: i32) -> (i32, i32) {
    %c0_i32 = arith.constant 0 : i32
    %c0_i32_0 = arith.constant 0 : i32
    %c0_i32_1 = arith.constant 0 : i32
    return %c0_i32, %c0_i32_0 : i32, i32
  }
  func.func @transform_3(%arg0: i32) -> (i32, i32) {
    %c0_i32 = arith.constant 0 : i32
    %c0_i32_0 = arith.constant 0 : i32
    return %arg0, %c0_i32 : i32, i32
  }
}

</mosaic_0001>

<llo_original>
// kernel: fast_rcnn_predictor.1
$region0: #{fast_rcnn_predictor.1}
  #allocation0 [shape = 'u32[]', space=smem, size = 0x4, offset = 0x4, fixed_abs, tag = 'smem constant byte address 0x4 - core index']
  #allocation1 [shape = 'u32[72,128]{1,0:T(1,128)}', space=vmem, size = 0x9000, scoped, tag = 'internal scratch']
  %s0 = inlined_call_operand.vmem [shape: f32[16,1024], index: 0, kind: input, shape index: {}]
  %s1 = inlined_call_operand.hbm [shape: bf16[1024,128], index: 1, kind: input, shape index: {}]
  %s2 = inlined_call_operand.vmem [shape: f32[1,128], index: 2, kind: input, shape index: {}]
  %s3 = inlined_call_operand.vmem [shape: f32[16,128], index: 3, kind: output, shape index: {}]
  %s4 = sld [smem:[#allocation0]]
  $region26: #{fast_rcnn_predictor.1} parent=0
    _
  %s6 = ssub.s32 1, %s4
  %s7 = scalar_select 0, %s6, %s4
  $region1: #{fast_rcnn_predictor.1} parent=0
    #allocation2 [shape = 'u8[262144]{0}', space=vmem, size = 0x40000, scoped, tag = 'input window, operand 1, single buffered']
    #allocation3 [shape = 's32[1]{0}', space=sflag, size = 0x4, scoped, tag = 'scoped memory for fast_rcnn_predictor.1']
    %8 = vsyncpa [#allocation3], 0
    // Predicated region
    $region2: #{fast_rcnn_predictor.1} parent=1 // pred_check
      _
    $region3: #{fast_rcnn_predictor.1} parent=1 // pred_check_branch
      %10 = sbr.rel (0) target = $region5
    $region4: #{fast_rcnn_predictor.1} parent=1 // pred_region
      _
    $region5: #{fast_rcnn_predictor.1} parent=1 // pred_fallthru
      _
    // Predicated region
    $region6: #{fast_rcnn_predictor.1} parent=1 // pred_check
      _
    $region7: #{fast_rcnn_predictor.1} parent=1 // pred_check_branch
      %12 = sbr.rel (0) target = $region9
    $region8: #{fast_rcnn_predictor.1} parent=1 // pred_region
      %14 = vsyncadd [#allocation3], 0
      %s15 = sshll.u32 %s1, 4
      %s16 = int_to_ptr.hbm [resolvable:$true] %s15
      %s17 = sshll.u32 [#allocation2], 4
      %s18 = int_to_ptr.vmem [resolvable:$true] %s17
      %23 = dma.hbm_to_vmem [thread:$0]  %s16, 8192, %s18, [#allocation3], 64, 64, 4
    $region9: #{fast_rcnn_predictor.1} parent=1 // pred_fallthru
      _
    // Predicated region
    $region10: #{fast_rcnn_predictor.1} parent=1 // pred_check
      _
    $region11: #{fast_rcnn_predictor.1} parent=1 // pred_check_branch
      %25 = sbr.rel (0) target = $region13
    $region12: #{fast_rcnn_predictor.1} parent=1 // pred_region
      _
    $region13: #{fast_rcnn_predictor.1} parent=1 // pred_fallthru
      _
    // Predicated region
    $region14: #{fast_rcnn_predictor.1} parent=1 // pred_check
      _
    $region15: #{fast_rcnn_predictor.1} parent=1 // pred_check_branch
      %27 = sbr.rel (0) target = $region17
    $region16: #{fast_rcnn_predictor.1} parent=1 // pred_region
      %29 = dma.done [#allocation3], 8192
    $region17: #{fast_rcnn_predictor.1} parent=1 // pred_fallthru
      _
    %v30 = vld [vmem:[%s0] sm:$0xff]
    %v31 = vld [vmem:[%s0 + $0x8] sm:$0xff]
    %v32 = vld [vmem:[%s0 + $0x10] sm:$0xff]
    %v33 = vld [vmem:[%s0 + $0x18] sm:$0xff]
    %v34 = vld [vmem:[%s0 + $0x20] sm:$0xff]
    %v35 = vld [vmem:[%s0 + $0x28] sm:$0xff]
    %v36 = vld [vmem:[%s0 + $0x30] sm:$0xff]
    %v37 = vld [vmem:[%s0 + $0x38] sm:$0xff]
    %v38 = vld [vmem:[%s0 + $0x40] sm:$0xff]
    %v39 = vld [vmem:[%s0 + $0x48] sm:$0xff]
    %v40 = vld [vmem:[%s0 + $0x50] sm:$0xff]
    %v41 = vld [vmem:[%s0 + $0x58] sm:$0xff]
    %v42 = vld [vmem:[%s0 + $0x60] sm:$0xff]
    %v43 = vld [vmem:[%s0 + $0x68] sm:$0xff]
    %v44 = vld [vmem:[%s0 + $0x70] sm:$0xff]
    %v45 = vld [vmem:[%s0 + $0x78] sm:$0xff]
    %v46 = vpack.c.bf16 %v38, %v30
    %v47 = vpack.c.bf16 %v39, %v31
    %v48 = vpack.c.bf16 %v40, %v32
    %v49 = vpack.c.bf16 %v41, %v33
    %v50 = vpack.c.bf16 %v42, %v34
    %v51 = vpack.c.bf16 %v43, %v35
    %v52 = vpack.c.bf16 %v44, %v36
    %v53 = vpack.c.bf16 %v45, %v37
    %v54 = vld [vmem:[#allocation2] sm:$0xf]
    %v55 = vld [vmem:[#allocation2 + $0x4] sm:$0xf]
    %v56 = vld [vmem:[#allocation2 + $0x8] sm:$0xf]
    %v57 = vld [vmem:[#allocation2 + $0xc] sm:$0xf]
    %v58 = vld [vmem:[#allocation2 + $0x10] sm:$0xf]
    %v59 = vld [vmem:[#allocation2 + $0x14] sm:$0xf]
    %v60 = vld [vmem:[#allocation2 + $0x18] sm:$0xf]
    %v61 = vld [vmem:[#allocation2 + $0x1c] sm:$0xf]
    %v62 = vld [vmem:[#allocation2 + $0x20] sm:$0xf]
    %v63 = vld [vmem:[#allocation2 + $0x24] sm:$0xf]
    %v64 = vld [vmem:[#allocation2 + $0x28] sm:$0xf]
    %v65 = vld [vmem:[#allocation2 + $0x2c] sm:$0xf]
    %v66 = vld [vmem:[#allocation2 + $0x30] sm:$0xf]
    %v67 = vld [vmem:[#allocation2 + $0x34] sm:$0xf]
    %v68 = vld [vmem:[#allocation2 + $0x38] sm:$0xf]
    %v69 = vld [vmem:[#allocation2 + $0x3c] sm:$0xf]
    %v70 = vld [vmem:[#allocation2 + $0x40] sm:$0xf]
    %v71 = vld [vmem:[#allocation2 + $0x44] sm:$0xf]
    %v72 = vld [vmem:[#allocation2 + $0x48] sm:$0xf]
    %v73 = vld [vmem:[#allocation2 + $0x4c] sm:$0xf]
    %v74 = vld [vmem:[#allocation2 + $0x50] sm:$0xf]
    %v75 = vld [vmem:[#allocation2 + $0x54] sm:$0xf]
    %v76 = vld [vmem:[#allocation2 + $0x58] sm:$0xf]
    %v77 = vld [vmem:[#allocation2 + $0x5c] sm:$0xf]
    %v78 = vld [vmem:[#allocation2 + $0x60] sm:$0xf]
    %v79 = vld [vmem:[#allocation2 + $0x64] sm:$0xf]
    %v80 = vld [vmem:[#allocation2 + $0x68] sm:$0xf]
    %v81 = vld [vmem:[#allocation2 + $0x6c] sm:$0xf]
    %v82 = vld [vmem:[#allocation2 + $0x70] sm:$0xf]
    %v83 = vld [vmem:[#allocation2 + $0x74] sm:$0xf]
    %v84 = vld [vmem:[#allocation2 + $0x78] sm:$0xf]
    %v85 = vld [vmem:[#allocation2 + $0x7c] sm:$0xf]
    %v86 = vld [vmem:[#allocation2 + $0x80] sm:$0xf]
    %v87 = vld [vmem:[#allocation2 + $0x84] sm:$0xf]
    %v88 = vld [vmem:[#allocation2 + $0x88] sm:$0xf]
    %v89 = vld [vmem:[#allocation2 + $0x8c] sm:$0xf]
    %v90 = vld [vmem:[#allocation2 + $0x90] sm:$0xf]
    %v91 = vld [vmem:[#allocation2 + $0x94] sm:$0xf]
    %v92 = vld [vmem:[#allocation2 + $0x98] sm:$0xf]
    %v93 = vld [vmem:[#allocation2 + $0x9c] sm:$0xf]
    %v94 = vld [vmem:[#allocation2 + $0xa0] sm:$0xf]
    %v95 = vld [vmem:[#allocation2 + $0xa4] sm:$0xf]
    %v96 = vld [vmem:[#allocation2 + $0xa8] sm:$0xf]
    %v97 = vld [vmem:[#allocation2 + $0xac] sm:$0xf]
    %v98 = vld [vmem:[#allocation2 + $0xb0] sm:$0xf]
    %v99 = vld [vmem:[#allocation2 + $0xb4] sm:$0xf]
    %v100 = vld [vmem:[#allocation2 + $0xb8] sm:$0xf]
    %v101 = vld [vmem:[#allocation2 + $0xbc] sm:$0xf]
    %v102 = vld [vmem:[#allocation2 + $0xc0] sm:$0xf]
    %v103 = vld [vmem:[#allocation2 + $0xc4] sm:$0xf]
    %v104 = vld [vmem:[#allocation2 + $0xc8] sm:$0xf]
    %v105 = vld [vmem:[#allocation2 + $0xcc] sm:$0xf]
    %v106 = vld [vmem:[#allocation2 + $0xd0] sm:$0xf]
    %v107 = vld [vmem:[#allocation2 + $0xd4] sm:$0xf]
    %v108 = vld [vmem:[#allocation2 + $0xd8] sm:$0xf]
    %v109 = vld [vmem:[#allocation2 + $0xdc] sm:$0xf]
    %v110 = vld [vmem:[#allocation2 + $0xe0] sm:$0xf]
    %v111 = vld [vmem:[#allocation2 + $0xe4] sm:$0xf]
    %v112 = vld [vmem:[#allocation2 + $0xe8] sm:$0xf]
    %v113 = vld [vmem:[#allocation2 + $0xec] sm:$0xf]
    %v114 = vld [vmem:[#allocation2 + $0xf0] sm:$0xf]
    %v115 = vld [vmem:[#allocation2 + $0xf4] sm:$0xf]
    %v116 = vld [vmem:[#allocation2 + $0xf8] sm:$0xf]
    %v117 = vld [vmem:[#allocation2 + $0xfc] sm:$0xf]
    %v118 = vld [vmem:[#allocation2 + $0x100] sm:$0xf]
    %v119 = vld [vmem:[#allocation2 + $0x104] sm:$0xf]
    %v120 = vld [vmem:[#allocation2 + $0x108] sm:$0xf]
    %v121 = vld [vmem:[#allocation2 + $0x10c] sm:$0xf]
    %v122 = vld [vmem:[#allocation2 + $0x110] sm:$0xf]
    %v123 = vld [vmem:[#allocation2 + $0x114] sm:$0xf]
    %v124 = vld [vmem:[#allocation2 + $0x118] sm:$0xf]
    %v125 = vld [vmem:[#allocation2 + $0x11c] sm:$0xf]
    %v126 = vld [vmem:[#allocation2 + $0x120] sm:$0xf]
    %v127 = vld [vmem:[#allocation2 + $0x124] sm:$0xf]
    %v128 = vld [vmem:[#allocation2 + $0x128] sm:$0xf]
    %v129 = vld [vmem:[#allocation2 + $0x12c] sm:$0xf]
    %v130 = vld [vmem:[#allocation2 + $0x130] sm:$0xf]
    %v131 = vld [vmem:[#allocation2 + $0x134] sm:$0xf]
    %v132 = vld [vmem:[#allocation2 + $0x138] sm:$0xf]
    %v133 = vld [vmem:[#allocation2 + $0x13c] sm:$0xf]
    %v134 = vld [vmem:[#allocation2 + $0x140] sm:$0xf]
    %v135 = vld [vmem:[#allocation2 + $0x144] sm:$0xf]
    %v136 = vld [vmem:[#allocation2 + $0x148] sm:$0xf]
    %v137 = vld [vmem:[#allocation2 + $0x14c] sm:$0xf]
    %v138 = vld [vmem:[#allocation2 + $0x150] sm:$0xf]
    %v139 = vld [vmem:[#allocation2 + $0x154] sm:$0xf]
    %v140 = vld [vmem:[#allocation2 + $0x158] sm:$0xf]
    %v141 = vld [vmem:[#allocation2 + $0x15c] sm:$0xf]
    %v142 = vld [vmem:[#allocation2 + $0x160] sm:$0xf]
    %v143 = vld [vmem:[#allocation2 + $0x164] sm:$0xf]
    %v144 = vld [vmem:[#allocation2 + $0x168] sm:$0xf]
    %v145 = vld [vmem:[#allocation2 + $0x16c] sm:$0xf]
    %v146 = vld [vmem:[#allocation2 + $0x170] sm:$0xf]
    %v147 = vld [vmem:[#allocation2 + $0x174] sm:$0xf]
    %v148 = vld [vmem:[#allocation2 + $0x178] sm:$0xf]
    %v149 = vld [vmem:[#allocation2 + $0x17c] sm:$0xf]
    %v150 = vld [vmem:[#allocation2 + $0x180] sm:$0xf]
    %v151 = vld [vmem:[#allocation2 + $0x184] sm:$0xf]
    %v152 = vld [vmem:[#allocation2 + $0x188] sm:$0xf]
    %v153 = vld [vmem:[#allocation2 + $0x18c] sm:$0xf]
    %v154 = vld [vmem:[#allocation2 + $0x190] sm:$0xf]
    %v155 = vld [vmem:[#allocation2 + $0x194] sm:$0xf]
    %v156 = vld [vmem:[#allocation2 + $0x198] sm:$0xf]
    %v157 = vld [vmem:[#allocation2 + $0x19c] sm:$0xf]
    %v158 = vld [vmem:[#allocation2 + $0x1a0] sm:$0xf]
    %v159 = vld [vmem:[#allocation2 + $0x1a4] sm:$0xf]
    %v160 = vld [vmem:[#allocation2 + $0x1a8] sm:$0xf]
    %v161 = vld [vmem:[#allocation2 + $0x1ac] sm:$0xf]
    %v162 = vld [vmem:[#allocation2 + $0x1b0] sm:$0xf]
    %v163 = vld [vmem:[#allocation2 + $0x1b4] sm:$0xf]
    %v164 = vld [vmem:[#allocation2 + $0x1b8] sm:$0xf]
    %v165 = vld [vmem:[#allocation2 + $0x1bc] sm:$0xf]
    %v166 = vld [vmem:[#allocation2 + $0x1c0] sm:$0xf]
    %v167 = vld [vmem:[#allocation2 + $0x1c4] sm:$0xf]
    %v168 = vld [vmem:[#allocation2 + $0x1c8] sm:$0xf]
    %v169 = vld [vmem:[#allocation2 + $0x1cc] sm:$0xf]
    %v170 = vld [vmem:[#allocation2 + $0x1d0] sm:$0xf]
    %v171 = vld [vmem:[#allocation2 + $0x1d4] sm:$0xf]
    %v172 = vld [vmem:[#allocation2 + $0x1d8] sm:$0xf]
    %v173 = vld [vmem:[#allocation2 + $0x1dc] sm:$0xf]
    %v174 = vld [vmem:[#allocation2 + $0x1e0] sm:$0xf]
    %v175 = vld [vmem:[#allocation2 + $0x1e4] sm:$0xf]
    %v176 = vld [vmem:[#allocation2 + $0x1e8] sm:$0xf]
    %v177 = vld [vmem:[#allocation2 + $0x1ec] sm:$0xf]
    %v178 = vld [vmem:[#allocation2 + $0x1f0] sm:$0xf]
    %v179 = vld [vmem:[#allocation2 + $0x1f4] sm:$0xf]
    %v180 = vld [vmem:[#allocation2 + $0x1f8] sm:$0xf]
    %v181 = vld [vmem:[#allocation2 + $0x1fc] sm:$0xf]
    %v182 = vld [vmem:[%s2] sm:$0x1]
    %v184 = vperm.slane %v182, 0
    %v314 = vunpack.c.l.b16 %v54
    %v315 = vunpack.c.l.b16 %v55
    %v316 = vunpack.c.l.b16 %v56
    %v317 = vunpack.c.l.b16 %v57
    %v318 = vunpack.c.l.b16 %v58
    %v319 = vunpack.c.l.b16 %v59
    %v320 = vunpack.c.l.b16 %v60
    %v321 = vunpack.c.l.b16 %v61
    %v322 = vunpack.c.l.b16 %v62
    %v323 = vunpack.c.l.b16 %v63
    %v324 = vunpack.c.l.b16 %v64
    %v325 = vunpack.c.l.b16 %v65
    %v326 = vunpack.c.l.b16 %v66
    %v327 = vunpack.c.l.b16 %v67
    %v328 = vunpack.c.l.b16 %v68
    %v329 = vunpack.c.l.b16 %v69
    %v330 = vunpack.c.l.b16 %v70
    %v331 = vunpack.c.l.b16 %v71
    %v332 = vunpack.c.l.b16 %v72
    %v333 = vunpack.c.l.b16 %v73
    %v334 = vunpack.c.l.b16 %v74
    %v335 = vunpack.c.l.b16 %v75
    %v336 = vunpack.c.l.b16 %v76
    %v337 = vunpack.c.l.b16 %v77
    %v338 = vunpack.c.l.b16 %v78
    %v339 = vunpack.c.l.b16 %v79
    %v340 = vunpack.c.l.b16 %v80
    %v341 = vunpack.c.l.b16 %v81
    %v342 = vunpack.c.l.b16 %v82
    %v343 = vunpack.c.l.b16 %v83
    %v344 = vunpack.c.l.b16 %v84
    %v345 = vunpack.c.l.b16 %v85
    %v346 = vunpack.c.l.b16 %v86
    %v347 = vunpack.c.l.b16 %v87
    %v348 = vunpack.c.l.b16 %v88
    %v349 = vunpack.c.l.b16 %v89
    %v350 = vunpack.c.l.b16 %v90
    %v351 = vunpack.c.l.b16 %v91
    %v352 = vunpack.c.l.b16 %v92
    %v353 = vunpack.c.l.b16 %v93
    %v354 = vunpack.c.l.b16 %v94
    %v355 = vunpack.c.l.b16 %v95
    %v356 = vunpack.c.l.b16 %v96
    %v357 = vunpack.c.l.b16 %v97
    %v358 = vunpack.c.l.b16 %v98
    %v359 = vunpack.c.l.b16 %v99
    %v360 = vunpack.c.l.b16 %v100
    %v361 = vunpack.c.l.b16 %v101
    %v362 = vunpack.c.l.b16 %v102
    %v363 = vunpack.c.l.b16 %v103
    %v364 = vunpack.c.l.b16 %v104
    %v365 = vunpack.c.l.b16 %v105
    %v366 = vunpack.c.l.b16 %v106
    %v367 = vunpack.c.l.b16 %v107
    %v368 = vunpack.c.l.b16 %v108
    %v369 = vunpack.c.l.b16 %v109
    %v370 = vunpack.c.l.b16 %v110
    %v371 = vunpack.c.l.b16 %v111
    %v372 = vunpack.c.l.b16 %v112
    %v373 = vunpack.c.l.b16 %v113
    %v374 = vunpack.c.l.b16 %v114
    %v375 = vunpack.c.l.b16 %v115
    %v376 = vunpack.c.l.b16 %v116
    %v377 = vunpack.c.l.b16 %v117
    %v378 = vunpack.c.l.b16 %v118
    %v379 = vunpack.c.l.b16 %v119
    %v380 = vunpack.c.l.b16 %v120
    %v381 = vunpack.c.l.b16 %v121
    %v382 = vunpack.c.l.b16 %v122
    %v383 = vunpack.c.l.b16 %v123
    %v384 = vunpack.c.l.b16 %v124
    %v385 = vunpack.c.l.b16 %v125
    %v386 = vunpack.c.l.b16 %v126
    %v387 = vunpack.c.l.b16 %v127
    %v388 = vunpack.c.l.b16 %v128
    %v389 = vunpack.c.l.b16 %v129
    %v390 = vunpack.c.l.b16 %v130
    %v391 = vunpack.c.l.b16 %v131
    %v392 = vunpack.c.l.b16 %v132
    %v393 = vunpack.c.l.b16 %v133
    %v394 = vunpack.c.l.b16 %v134
    %v395 = vunpack.c.l.b16 %v135
    %v396 = vunpack.c.l.b16 %v136
    %v397 = vunpack.c.l.b16 %v137
    %v398 = vunpack.c.l.b16 %v138
    %v399 = vunpack.c.l.b16 %v139
    %v400 = vunpack.c.l.b16 %v140
    %v401 = vunpack.c.l.b16 %v141
    %v402 = vunpack.c.l.b16 %v142
    %v403 = vunpack.c.l.b16 %v143
    %v404 = vunpack.c.l.b16 %v144
    %v405 = vunpack.c.l.b16 %v145
    %v406 = vunpack.c.l.b16 %v146
    %v407 = vunpack.c.l.b16 %v147
    %v408 = vunpack.c.l.b16 %v148
    %v409 = vunpack.c.l.b16 %v149
    %v410 = vunpack.c.l.b16 %v150
    %v411 = vunpack.c.l.b16 %v151
    %v412 = vunpack.c.l.b16 %v152
    %v413 = vunpack.c.l.b16 %v153
    %v414 = vunpack.c.l.b16 %v154
    %v415 = vunpack.c.l.b16 %v155
    %v416 = vunpack.c.l.b16 %v156
    %v417 = vunpack.c.l.b16 %v157
    %v418 = vunpack.c.l.b16 %v158
    %v419 = vunpack.c.l.b16 %v159
    %v420 = vunpack.c.l.b16 %v160
    %v421 = vunpack.c.l.b16 %v161
    %v422 = vunpack.c.l.b16 %v162
    %v423 = vunpack.c.l.b16 %v163
    %v424 = vunpack.c.l.b16 %v164
    %v425 = vunpack.c.l.b16 %v165
    %v426 = vunpack.c.l.b16 %v166
    %v427 = vunpack.c.l.b16 %v167
    %v428 = vunpack.c.l.b16 %v168
    %v429 = vunpack.c.l.b16 %v169
    %v430 = vunpack.c.l.b16 %v170
    %v431 = vunpack.c.l.b16 %v171
    %v432 = vunpack.c.l.b16 %v172
    %v433 = vunpack.c.l.b16 %v173
    %v434 = vunpack.c.l.b16 %v174
    %v435 = vunpack.c.l.b16 %v175
    %v436 = vunpack.c.l.b16 %v176
    %v437 = vunpack.c.l.b16 %v177
    %v438 = vunpack.c.l.b16 %v178
    %v439 = vunpack.c.l.b16 %v179
    %v440 = vunpack.c.l.b16 %v180
    %v441 = vunpack.c.l.b16 %v181
    %v442 = vpack.c.b16 %v315, %v314
    %v443 = vpack.c.b16 %v317, %v316
    %v444 = vpack.c.b16 %v319, %v318
    %v445 = vpack.c.b16 %v321, %v320
    %v446 = vpack.c.b16 %v323, %v322
    %v447 = vpack.c.b16 %v325, %v324
    %v448 = vpack.c.b16 %v327, %v326
    %v449 = vpack.c.b16 %v329, %v328
    %v450 = vpack.c.b16 %v331, %v330
    %v451 = vpack.c.b16 %v333, %v332
    %v452 = vpack.c.b16 %v335, %v334
    %v453 = vpack.c.b16 %v337, %v336
    %v454 = vpack.c.b16 %v339, %v338
    %v455 = vpack.c.b16 %v341, %v340
    %v456 = vpack.c.b16 %v343, %v342
    %v457 = vpack.c.b16 %v345, %v344
    %v458 = vpack.c.b16 %v347, %v346
    %v459 = vpack.c.b16 %v349, %v348
    %v460 = vpack.c.b16 %v351, %v350
    %v461 = vpack.c.b16 %v353, %v352
    %v462 = vpack.c.b16 %v355, %v354
    %v463 = vpack.c.b16 %v357, %v356
    %v464 = vpack.c.b16 %v359, %v358
    %v465 = vpack.c.b16 %v361, %v360
    %v466 = vpack.c.b16 %v363, %v362
    %v467 = vpack.c.b16 %v365, %v364
    %v468 = vpack.c.b16 %v367, %v366
    %v469 = vpack.c.b16 %v369, %v368
    %v470 = vpack.c.b16 %v371, %v370
    %v471 = vpack.c.b16 %v373, %v372
    %v472 = vpack.c.b16 %v375, %v374
    %v473 = vpack.c.b16 %v377, %v376
    %v474 = vpack.c.b16 %v379, %v378
    %v475 = vpack.c.b16 %v381, %v380
    %v476 = vpack.c.b16 %v383, %v382
    %v477 = vpack.c.b16 %v385, %v384
    %v478 = vpack.c.b16 %v387, %v386
    %v479 = vpack.c.b16 %v389, %v388
    %v480 = vpack.c.b16 %v391, %v390
    %v481 = vpack.c.b16 %v393, %v392
    %v482 = vpack.c.b16 %v395, %v394
    %v483 = vpack.c.b16 %v397, %v396
    %v484 = vpack.c.b16 %v399, %v398
    %v485 = vpack.c.b16 %v401, %v400
    %v486 = vpack.c.b16 %v403, %v402
    %v487 = vpack.c.b16 %v405, %v404
    %v488 = vpack.c.b16 %v407, %v406
    %v489 = vpack.c.b16 %v409, %v408
    %v490 = vpack.c.b16 %v411, %v410
    %v491 = vpack.c.b16 %v413, %v412
    %v492 = vpack.c.b16 %v415, %v414
    %v493 = vpack.c.b16 %v417, %v416
    %v494 = vpack.c.b16 %v419, %v418
    %v495 = vpack.c.b16 %v421, %v420
    %v496 = vpack.c.b16 %v423, %v422
    %v497 = vpack.c.b16 %v425, %v424
    %v498 = vpack.c.b16 %v427, %v426
    %v499 = vpack.c.b16 %v429, %v428
    %v500 = vpack.c.b16 %v431, %v430
    %v501 = vpack.c.b16 %v433, %v432
    %v502 = vpack.c.b16 %v435, %v434
    %v503 = vpack.c.b16 %v437, %v436
    %v504 = vpack.c.b16 %v439, %v438
    %v505 = vpack.c.b16 %v441, %v440
    %570 = vmatpush.bf16.msra.mxu0 %v449
    %571 = vmatpush.bf16.msra.mxu0 %v448
    %572 = vmatpush.bf16.msra.mxu0 %v447
    %573 = vmatpush.bf16.msra.mxu0 %v446
    %574 = vmatpush.bf16.msra.mxu0 %v445
    %575 = vmatpush.bf16.msra.mxu0 %v444
    %576 = vmatpush.bf16.msra.mxu0 %v443
    %577 = vmatpush.bf16.msra.mxu0 %v442
    %578 = vmatmul.bf16.gmra.mxu0 %v46
    %v579 = vpop.f32.mrf.mxu0
    %v580 = vadd.f32 %v184, %v579
    %v581 = vpop.f32.mrf.mxu0
    %v582 = vadd.f32 %v184, %v581
    %583 = vdwg.mxu0
    %584 = vmatpush.bf16.msra.mxu0 %v457
    %585 = vmatpush.bf16.msra.mxu0 %v456
    %586 = vmatpush.bf16.msra.mxu0 %v455
    %587 = vmatpush.bf16.msra.mxu0 %v454
    %588 = vmatpush.bf16.msra.mxu0 %v453
    %589 = vmatpush.bf16.msra.mxu0 %v452
    %590 = vmatpush.bf16.msra.mxu0 %v451
    %591 = vmatpush.bf16.msra.mxu0 %v450
    %592 = vmatmul.bf16.gmra.mxu0 %v47
    %v593 = vpop.f32.mrf.mxu0
    %v594 = vadd.f32 %v580, %v593
    %v595 = vpop.f32.mrf.mxu0
    %v596 = vadd.f32 %v582, %v595
    %597 = vdwg.mxu0
    %598 = vmatpush.bf16.msra.mxu0 %v465
    %599 = vmatpush.bf16.msra.mxu0 %v464
    %600 = vmatpush.bf16.msra.mxu0 %v463
    %601 = vmatpush.bf16.msra.mxu0 %v462
    %602 = vmatpush.bf16.msra.mxu0 %v461
    %603 = vmatpush.bf16.msra.mxu0 %v460
    %604 = vmatpush.bf16.msra.mxu0 %v459
    %605 = vmatpush.bf16.msra.mxu0 %v458
    %606 = vmatmul.bf16.gmra.mxu0 %v48
    %v607 = vpop.f32.mrf.mxu0
    %v608 = vadd.f32 %v594, %v607
    %v609 = vpop.f32.mrf.mxu0
    %v610 = vadd.f32 %v596, %v609
    %611 = vdwg.mxu0
    %612 = vmatpush.bf16.msra.mxu0 %v473
    %613 = vmatpush.bf16.msra.mxu0 %v472
    %614 = vmatpush.bf16.msra.mxu0 %v471
    %615 = vmatpush.bf16.msra.mxu0 %v470
    %616 = vmatpush.bf16.msra.mxu0 %v469
    %617 = vmatpush.bf16.msra.mxu0 %v468
    %618 = vmatpush.bf16.msra.mxu0 %v467
    %619 = vmatpush.bf16.msra.mxu0 %v466
    %620 = vmatmul.bf16.gmra.mxu0 %v49
    %v621 = vpop.f32.mrf.mxu0
    %v622 = vadd.f32 %v608, %v621
    %v623 = vpop.f32.mrf.mxu0
    %v624 = vadd.f32 %v610, %v623
    %625 = vdwg.mxu0
    %626 = vmatpush.bf16.msra.mxu0 %v481
    %627 = vmatpush.bf16.msra.mxu0 %v480
    %628 = vmatpush.bf16.msra.mxu0 %v479
    %629 = vmatpush.bf16.msra.mxu0 %v478
    %630 = vmatpush.bf16.msra.mxu0 %v477
    %631 = vmatpush.bf16.msra.mxu0 %v476
    %632 = vmatpush.bf16.msra.mxu0 %v475
    %633 = vmatpush.bf16.msra.mxu0 %v474
    %634 = vmatmul.bf16.gmra.mxu0 %v50
    %v635 = vpop.f32.mrf.mxu0
    %v636 = vadd.f32 %v622, %v635
    %v637 = vpop.f32.mrf.mxu0
    %v638 = vadd.f32 %v624, %v637
    %639 = vdwg.mxu0
    %640 = vmatpush.bf16.msra.mxu0 %v489
    %641 = vmatpush.bf16.msra.mxu0 %v488
    %642 = vmatpush.bf16.msra.mxu0 %v487
    %643 = vmatpush.bf16.msra.mxu0 %v486
    %644 = vmatpush.bf16.msra.mxu0 %v485
    %645 = vmatpush.bf16.msra.mxu0 %v484
    %646 = vmatpush.bf16.msra.mxu0 %v483
    %647 = vmatpush.bf16.msra.mxu0 %v482
    %648 = vmatmul.bf16.gmra.mxu0 %v51
    %v649 = vpop.f32.mrf.mxu0
    %v650 = vadd.f32 %v636, %v649
    %v651 = vpop.f32.mrf.mxu0
    %v652 = vadd.f32 %v638, %v651
    %653 = vdwg.mxu0
    %654 = vmatpush.bf16.msra.mxu0 %v497
    %655 = vmatpush.bf16.msra.mxu0 %v496
    %656 = vmatpush.bf16.msra.mxu0 %v495
    %657 = vmatpush.bf16.msra.mxu0 %v494
    %658 = vmatpush.bf16.msra.mxu0 %v493
    %659 = vmatpush.bf16.msra.mxu0 %v492
    %660 = vmatpush.bf16.msra.mxu0 %v491
    %661 = vmatpush.bf16.msra.mxu0 %v490
    %662 = vmatmul.bf16.gmra.mxu0 %v52
    %v663 = vpop.f32.mrf.mxu0
    %v664 = vadd.f32 %v650, %v663
    %v665 = vpop.f32.mrf.mxu0
    %v666 = vadd.f32 %v652, %v665
    %667 = vdwg.mxu0
    %668 = vmatpush.bf16.msra.mxu0 %v505
    %669 = vmatpush.bf16.msra.mxu0 %v504
    %670 = vmatpush.bf16.msra.mxu0 %v503
    %671 = vmatpush.bf16.msra.mxu0 %v502
    %672 = vmatpush.bf16.msra.mxu0 %v501
    %673 = vmatpush.bf16.msra.mxu0 %v500
    %674 = vmatpush.bf16.msra.mxu0 %v499
    %675 = vmatpush.bf16.msra.mxu0 %v498
    %676 = vmatmul.bf16.gmra.mxu0 %v53
    %v677 = vpop.f32.mrf.mxu0
    %v678 = vadd.f32 %v664, %v677
    %v679 = vpop.f32.mrf.mxu0
    %v680 = vadd.f32 %v666, %v679
    %681 = vdwg.mxu0
    %682 = vst [vmem:[%s3] sm:$0xff] %v678
    %683 = vst [vmem:[%s3 + $0x8] sm:$0xff] %v680
    // Predicated region
    $region18: #{fast_rcnn_predictor.1} parent=1 // pred_check
      _
    $region19: #{fast_rcnn_predictor.1} parent=1 // pred_check_branch
      %685 = sbr.rel (0) target = $region21
    $region20: #{fast_rcnn_predictor.1} parent=1 // pred_region
      _
    $region21: #{fast_rcnn_predictor.1} parent=1 // pred_fallthru
      _
    // Predicated region
    $region22: #{fast_rcnn_predictor.1} parent=1 // pred_check
      _
    $region23: #{fast_rcnn_predictor.1} parent=1 // pred_check_branch
      %687 = sbr.rel (0) target = $region25
    $region24: #{fast_rcnn_predictor.1} parent=1 // pred_region
      _
    $region25: #{fast_rcnn_predictor.1} parent=1 // pred_fallthru
      _
    %688 = vsyncpa [#allocation3], 1

</llo_original>
